<compile_context>
chip_gen: v7x
topology: tpu7x:2x2x1
jax: 0.10.0
libtpu: 0.0.40
codegen_flags: <defaults>
</compile_context>

<pallas_src>
import jax
import jax.numpy as jnp
from jax.experimental import pallas as pl
from jax.experimental.pallas import tpu as pltpu


def merge_kernel(x1_ref, x2_ref, w1a_ref, w1b_ref, b1_ref, w2_ref, b2_ref, o_ref):
    # Feature-major refs: x*_ref = (dim_in, TB), o_ref = (dim4, TB);
    # weights in PyTorch (out_features, in_features) layout; biases (H, 1).
    # fc1 on the virtual concat: W1 @ cat([x1,x2],1).T == W1a @ x1.T + W1b @ x2.T
    h = jnp.dot(w1a_ref[...], x1_ref[...], preferred_element_type=jnp.float32)
    h = h + jnp.dot(w1b_ref[...], x2_ref[...], preferred_element_type=jnp.float32)
    h = jnp.maximum(h + b1_ref[...], 0.0)                 # bias + ReLU in f32
    h = h.astype(w2_ref.dtype)                            # bf16 into the MXU if requested
    out = jnp.dot(w2_ref[...], h, preferred_element_type=jnp.float32) + b2_ref[...]
    o_ref[...] = out.astype(o_ref.dtype)


def _round_up(a, m):
    return (a + m - 1) // m * m


def _choose_batch_tile(B, tb):
    # Batch lives on the lane axis, so a tile must be a multiple of 128 unless
    # it covers the whole batch.  Cap it so the grid has >= 2 steps when
    # possible (keeps both v7x TensorCores busy under "parallel" semantics).
    if B <= 128:
        return B
    half = _round_up(pl.cdiv(B, 2), 128)
    return max(128, min(_round_up(tb, 128), half))


def merge_forward(x1, x2, w1, b1, w2, b2, *, tb=512, operand_dtype=jnp.float32):
    """MergeLayer forward: fc2(relu(fc1(cat([x1, x2], 1)))).

    x1: (B, dim1), x2: (B, dim2); w1: (dim3, dim1+dim2), b1: (dim3,),
    w2: (dim4, dim3), b2: (dim4,) -- PyTorch nn.Linear layouts.
    Returns (B, dim4) float32.
    """
    B, dim1 = x1.shape
    dim2 = x2.shape[1]
    dim3, din = w1.shape
    dim4 = w2.shape[0]
    assert din == dim1 + dim2 and x2.shape[0] == B and w2.shape[1] == dim3

    # Feature-major operands (one-time layout plumbing in the wrapper).
    x1t = x1.T.astype(operand_dtype)                 # (dim1, B)
    x2t = x2.T.astype(operand_dtype)                 # (dim2, B)
    w1a = w1[:, :dim1].astype(operand_dtype)         # (dim3, dim1)
    w1b = w1[:, dim1:].astype(operand_dtype)         # (dim3, dim2)
    w2c = w2.astype(operand_dtype)                   # (dim4, dim3)
    b1c = b1.reshape(dim3, 1).astype(jnp.float32)    # post-MXU math stays f32
    b2c = b2.reshape(dim4, 1).astype(jnp.float32)

    tb_eff = _choose_batch_tile(B, tb)
    grid = (pl.cdiv(B, tb_eff),)

    itemsize = jnp.dtype(operand_dtype).itemsize
    flops = 2 * B * ((dim1 + dim2) * dim3 + dim3 * dim4)
    bytes_accessed = (
        itemsize * (B * (dim1 + dim2) + (dim1 + dim2) * dim3 + dim3 * dim4)
        + 4 * (dim3 + dim4 + B * dim4)
    )
    cost = pl.CostEstimate(flops=flops, transcendentals=0,
                           bytes_accessed=bytes_accessed)

    out_t = pl.pallas_call(
        merge_kernel,
        out_shape=jax.ShapeDtypeStruct((dim4, B), jnp.float32),
        grid=grid,
        in_specs=[
            pl.BlockSpec((dim1, tb_eff), lambda i: (0, i)),   # x1^T tile (lane-dense)
            pl.BlockSpec((dim2, tb_eff), lambda i: (0, i)),   # x2^T tile (lane-dense)
            pl.BlockSpec((dim3, dim1), lambda i: (0, 0)),     # W1a, VMEM-resident
            pl.BlockSpec((dim3, dim2), lambda i: (0, 0)),     # W1b, VMEM-resident
            pl.BlockSpec((dim3, 1), lambda i: (0, 0)),        # b1 (column)
            pl.BlockSpec((dim4, dim3), lambda i: (0, 0)),     # W2, VMEM-resident
            pl.BlockSpec((dim4, 1), lambda i: (0, 0)),        # b2 (column)
        ],
        out_specs=pl.BlockSpec((dim4, tb_eff), lambda i: (0, i)),
        compiler_params=pltpu.CompilerParams(
            dimension_semantics=("parallel",),
            vmem_limit_bytes=32 * 1024 * 1024,
        ),
        cost_estimate=cost,
    )(x1t, x2t, w1a, w1b, b1c, w2c, b2c)

    return out_t.T                                    # back to (B, dim4)


def init_merge_layer(key, dim1, dim2, dim3, dim4):
    """xavier_normal_ weights (as in the module), torch-default uniform biases.
    Weights stored PyTorch-style: (out_features, in_features)."""
    k1w, k1b, k2w, k2b = jax.random.split(key, 4)

    def xavier_normal(k, fan_out, fan_in):
        std = (2.0 / (fan_in + fan_out)) ** 0.5
        return std * jax.random.normal(k, (fan_out, fan_in), jnp.float32)

    def bias(k, fan_in, n):
        bound = 1.0 / (fan_in ** 0.5)
        return jax.random.uniform(k, (n,), jnp.float32, -bound, bound)

    w1 = xavier_normal(k1w, dim3, dim1 + dim2)
    b1 = bias(k1b, dim1 + dim2, dim3)
    w2 = xavier_normal(k2w, dim4, dim3)
    b2 = bias(k2b, dim3, dim4)
    return w1, b1, w2, b2


def _reference(x1, x2, w1, b1, w2, b2):
    x = jnp.concatenate([x1, x2], axis=1)
    h = jnp.maximum(x @ w1.T + b1, 0.0)
    return h @ w2.T + b2


if __name__ == "__main__":
    key = jax.random.PRNGKey(0)
    k_x1, k_x2, k_p, k_x1b, k_x2b = jax.random.split(key, 5)

    dim1, dim2, dim3, dim4 = 32, 32, 64, 16
    w1, b1, w2, b2 = init_merge_layer(k_p, dim1, dim2, dim3, dim4)

    # Small batch (single grid step, lane dim == full batch).
    B = 8
    x1 = jax.random.normal(k_x1, (B, dim1), jnp.float32)
    x2 = jax.random.normal(k_x2, (B, dim2), jnp.float32)
    y = jax.block_until_ready(merge_forward(x1, x2, w1, b1, w2, b2))
    ref = _reference(x1, x2, w1, b1, w2, b2)
    assert y.shape == (B, dim4)
    assert jnp.allclose(y, ref, atol=1e-5), "mismatch vs reference (small batch)"

    # Larger, non-multiple batch: 2-step grid with a clipped boundary block
    # (no wrapper-side padding); both v7x cores get a tile.
    Bl = 300
    x1b = jax.random.normal(k_x1b, (Bl, dim1), jnp.float32)
    x2b = jax.random.normal(k_x2b, (Bl, dim2), jnp.float32)
    yb = jax.block_until_ready(merge_forward(x1b, x2b, w1, b1, w2, b2))
    refb = _reference(x1b, x2b, w1, b1, w2, b2)
    assert yb.shape == (Bl, dim4)
    assert jnp.allclose(yb, refb, atol=1e-5), "mismatch vs reference (tiled batch)"

    # bf16 operands (v6e/v7x byte-reduction path); accumulation stays f32.
    yb16 = jax.block_until_ready(
        merge_forward(x1b, x2b, w1, b1, w2, b2, operand_dtype=jnp.bfloat16))
    assert yb16.shape == (Bl, dim4)
    assert bool(jnp.all(jnp.isfinite(yb16)))
    assert jnp.allclose(yb16, refb, atol=1e-1, rtol=1e-1), \
        "mismatch vs reference (bf16 operands)"

    print("KERNEL_OK")
</pallas_src>

<mosaic_0001>
module attributes {stable_mosaic.version = 11 : i64} {
  func.func @merge_kernel(%arg0: i32, %arg1: memref<32x8xf32, #tpu.memory_space<vmem>>, %arg2: memref<32x8xf32, #tpu.memory_space<vmem>>, %arg3: memref<64x32xf32, #tpu.memory_space<vmem>>, %arg4: memref<64x32xf32, #tpu.memory_space<vmem>>, %arg5: memref<64x1xf32, #tpu.memory_space<vmem>>, %arg6: memref<16x64xf32, #tpu.memory_space<vmem>>, %arg7: memref<16x1xf32, #tpu.memory_space<vmem>>, %arg8: memref<16x8xf32, #tpu.memory_space<vmem>>) attributes {dimension_semantics = [#tpu.dimension_semantics<parallel>], iteration_bounds = array<i64: 1>, scalar_prefetch = 0 : i64, scratch_operands = 0 : i64, tpu.core_type = #tpu.core_type<tc>, window_params = [{transform_indices = @transform_0, window_bounds = array<i64: 32, 8>}, {transform_indices = @transform_1, window_bounds = array<i64: 32, 8>}, {pipeline_mode = #tpu.pipeline_mode<synchronous>, transform_indices = @transform_2, window_bounds = array<i64: 64, 32>}, {pipeline_mode = #tpu.pipeline_mode<synchronous>, transform_indices = @transform_3, window_bounds = array<i64: 64, 32>}, {pipeline_mode = #tpu.pipeline_mode<synchronous>, transform_indices = @transform_4, window_bounds = array<i64: 64, 1>}, {pipeline_mode = #tpu.pipeline_mode<synchronous>, transform_indices = @transform_5, window_bounds = array<i64: 16, 64>}, {pipeline_mode = #tpu.pipeline_mode<synchronous>, transform_indices = @transform_6, window_bounds = array<i64: 16, 1>}, {transform_indices = @transform_7, window_bounds = array<i64: 16, 8>}]} {
    %c0 = arith.constant 0 : index
    %c0_0 = arith.constant 0 : index
    %0 = vector.load %arg3[%c0, %c0_0] : memref<64x32xf32, #tpu.memory_space<vmem>>, vector<64x32xf32>
    %c0_1 = arith.constant 0 : index
    %c0_2 = arith.constant 0 : index
    %1 = vector.load %arg1[%c0_1, %c0_2] : memref<32x8xf32, #tpu.memory_space<vmem>>, vector<32x8xf32>
    %cst = arith.constant dense<0.000000e+00> : vector<64x8xf32>
    %2 = tpu.matmul %0, %1, %cst {dimension_numbers = #tpu.dot_dimension_numbers<[1], [0], [0], [1], [0, 0, 1, 1], [], []>} : vector<64x32xf32>, vector<32x8xf32>, vector<64x8xf32> -> vector<64x8xf32>
    %c0_3 = arith.constant 0 : index
    %c0_4 = arith.constant 0 : index
    %3 = vector.load %arg4[%c0_3, %c0_4] : memref<64x32xf32, #tpu.memory_space<vmem>>, vector<64x32xf32>
    %c0_5 = arith.constant 0 : index
    %c0_6 = arith.constant 0 : index
    %4 = vector.load %arg2[%c0_5, %c0_6] : memref<32x8xf32, #tpu.memory_space<vmem>>, vector<32x8xf32>
    %cst_7 = arith.constant dense<0.000000e+00> : vector<64x8xf32>
    %5 = tpu.matmul %3, %4, %cst_7 {dimension_numbers = #tpu.dot_dimension_numbers<[1], [0], [0], [1], [0, 0, 1, 1], [], []>} : vector<64x32xf32>, vector<32x8xf32>, vector<64x8xf32> -> vector<64x8xf32>
    %6 = arith.addf %2, %5 : vector<64x8xf32>
    %c0_8 = arith.constant 0 : index
    %c0_9 = arith.constant 0 : index
    %7 = vector.load %arg5[%c0_8, %c0_9] : memref<64x1xf32, #tpu.memory_space<vmem>>, vector<64x1xf32>
    %8 = vector.broadcast %7 : vector<64x1xf32> to vector<64x8xf32>
    %9 = arith.addf %6, %8 : vector<64x8xf32>
    %cst_10 = arith.constant 0.000000e+00 : f32
    %10 = vector.broadcast %cst_10 : f32 to vector<64x8xf32>
    %11 = arith.maximumf %9, %10 : vector<64x8xf32>
    %c0_11 = arith.constant 0 : index
    %c0_12 = arith.constant 0 : index
    %12 = vector.load %arg6[%c0_11, %c0_12] : memref<16x64xf32, #tpu.memory_space<vmem>>, vector<16x64xf32>
    %cst_13 = arith.constant dense<0.000000e+00> : vector<16x8xf32>
    %13 = tpu.matmul %12, %11, %cst_13 {dimension_numbers = #tpu.dot_dimension_numbers<[1], [0], [0], [1], [0, 0, 1, 1], [], []>} : vector<16x64xf32>, vector<64x8xf32>, vector<16x8xf32> -> vector<16x8xf32>
    %c0_14 = arith.constant 0 : index
    %c0_15 = arith.constant 0 : index
    %14 = vector.load %arg7[%c0_14, %c0_15] : memref<16x1xf32, #tpu.memory_space<vmem>>, vector<16x1xf32>
    %15 = vector.broadcast %14 : vector<16x1xf32> to vector<16x8xf32>
    %16 = arith.addf %13, %15 : vector<16x8xf32>
    %c0_16 = arith.constant 0 : index
    %c0_17 = arith.constant 0 : index
    %17 = vector.load %arg8[%c0_16, %c0_17] : memref<16x8xf32, #tpu.memory_space<vmem>>, vector<16x8xf32>
    tpu.vector_store %arg8[%c0_16, %c0_17], %16 {strides = array<i32>} : memref<16x8xf32, #tpu.memory_space<vmem>>, vector<16x8xf32>,
    return
  }
  func.func @transform_0(%arg0: i32) -> (i32, i32) {
    %c0_i32 = arith.constant 0 : i32
    %c0_i32_0 = arith.constant 0 : i32
    return %c0_i32, %arg0 : i32, i32
  }
  func.func @transform_1(%arg0: i32) -> (i32, i32) {
    %c0_i32 = arith.constant 0 : i32
    %c0_i32_0 = arith.constant 0 : i32
    return %c0_i32, %arg0 : i32, i32
  }
  func.func @transform_2(%arg0: i32) -> (i32, i32) {
    %c0_i32 = arith.constant 0 : i32
    %c0_i32_0 = arith.constant 0 : i32
    %c0_i32_1 = arith.constant 0 : i32
    return %c0_i32, %c0_i32_0 : i32, i32
  }
  func.func @transform_3(%arg0: i32) -> (i32, i32) {
    %c0_i32 = arith.constant 0 : i32
    %c0_i32_0 = arith.constant 0 : i32
    %c0_i32_1 = arith.constant 0 : i32
    return %c0_i32, %c0_i32_0 : i32, i32
  }
  func.func @transform_4(%arg0: i32) -> (i32, i32) {
    %c0_i32 = arith.constant 0 : i32
    %c0_i32_0 = arith.constant 0 : i32
    %c0_i32_1 = arith.constant 0 : i32
    return %c0_i32, %c0_i32_0 : i32, i32
  }
  func.func @transform_5(%arg0: i32) -> (i32, i32) {
    %c0_i32 = arith.constant 0 : i32
    %c0_i32_0 = arith.constant 0 : i32
    %c0_i32_1 = arith.constant 0 : i32
    return %c0_i32, %c0_i32_0 : i32, i32
  }
  func.func @transform_6(%arg0: i32) -> (i32, i32) {
    %c0_i32 = arith.constant 0 : i32
    %c0_i32_0 = arith.constant 0 : i32
    %c0_i32_1 = arith.constant 0 : i32
    return %c0_i32, %c0_i32_0 : i32, i32
  }
  func.func @transform_7(%arg0: i32) -> (i32, i32) {
    %c0_i32 = arith.constant 0 : i32
    %c0_i32_0 = arith.constant 0 : i32
    return %c0_i32, %arg0 : i32, i32
  }
}

</mosaic_0001>

<llo_original>
// kernel: tpu_custom_call.1
$region0: #{tpu_custom_call.1}
  #allocation0 [shape = 'u32[]', space=smem, size = 0x4, offset = 0x4, fixed_abs, tag = 'smem constant byte address 0x4 - core index']
  #allocation1 [shape = 'u32[144,128]{1,0:T(1,128)}', space=vmem, size = 0x12000, scoped, tag = 'internal scratch']
  %s0 = inlined_call_operand.vmem [shape: f32[32,8], index: 0, kind: input, shape index: {}]
  %s1 = inlined_call_operand.vmem [shape: f32[32,8], index: 1, kind: input, shape index: {}]
  %s2 = inlined_call_operand.vmem [shape: f32[64,32], index: 2, kind: input, shape index: {}]
  %s3 = inlined_call_operand.vmem [shape: f32[64,32], index: 3, kind: input, shape index: {}]
  %s4 = inlined_call_operand.vmem [shape: f32[64,1], index: 4, kind: input, shape index: {}]
  %s5 = inlined_call_operand.vmem [shape: f32[16,64], index: 5, kind: input, shape index: {}]
  %s6 = inlined_call_operand.vmem [shape: f32[16,1], index: 6, kind: input, shape index: {}]
  %s7 = inlined_call_operand.vmem [shape: f32[16,8], index: 7, kind: output, shape index: {}]
  %s8 = sld [smem:[#allocation0]]
  $region38: #{tpu_custom_call.1} parent=0
    _
  %s10 = ssub.s32 1, %s8
  %s11 = scalar_select 0, %s10, %s8
  // Predicated region
  $region2: #{tpu_custom_call.1} parent=0 // pred_check
    _
  $region3: #{tpu_custom_call.1} parent=0 // pred_check_branch
    %13 = sbr.rel (0) target = $region5
  $region4: #{tpu_custom_call.1} parent=0 // pred_region
    _
  $region5: #{tpu_custom_call.1} parent=0 // pred_fallthru
    _
  // Predicated region
  $region6: #{tpu_custom_call.1} parent=0 // pred_check
    _
  $region7: #{tpu_custom_call.1} parent=0 // pred_check_branch
    %15 = sbr.rel (0) target = $region9
  $region8: #{tpu_custom_call.1} parent=0 // pred_region
    _
  $region9: #{tpu_custom_call.1} parent=0 // pred_fallthru
    _
  // Predicated region
  $region10: #{tpu_custom_call.1} parent=0 // pred_check
    _
  $region11: #{tpu_custom_call.1} parent=0 // pred_check_branch
    %17 = sbr.rel (0) target = $region13
  $region12: #{tpu_custom_call.1} parent=0 // pred_region
    _
  $region13: #{tpu_custom_call.1} parent=0 // pred_fallthru
    _
  // Predicated region
  $region14: #{tpu_custom_call.1} parent=0 // pred_check
    _
  $region15: #{tpu_custom_call.1} parent=0 // pred_check_branch
    %19 = sbr.rel (0) target = $region17
  $region16: #{tpu_custom_call.1} parent=0 // pred_region
    _
  $region17: #{tpu_custom_call.1} parent=0 // pred_fallthru
    _
  // Predicated region
  $region18: #{tpu_custom_call.1} parent=0 // pred_check
    _
  $region19: #{tpu_custom_call.1} parent=0 // pred_check_branch
    %21 = sbr.rel (0) target = $region21
  $region20: #{tpu_custom_call.1} parent=0 // pred_region
    _
  $region21: #{tpu_custom_call.1} parent=0 // pred_fallthru
    _
  // Predicated region
  $region22: #{tpu_custom_call.1} parent=0 // pred_check
    _
  $region23: #{tpu_custom_call.1} parent=0 // pred_check_branch
    %23 = sbr.rel (0) target = $region25
  $region24: #{tpu_custom_call.1} parent=0 // pred_region
    _
  $region25: #{tpu_custom_call.1} parent=0 // pred_fallthru
    _
  // Predicated region
  $region26: #{tpu_custom_call.1} parent=0 // pred_check
    _
  $region27: #{tpu_custom_call.1} parent=0 // pred_check_branch
    %25 = sbr.rel (0) target = $region29
  $region28: #{tpu_custom_call.1} parent=0 // pred_region
    _
  $region29: #{tpu_custom_call.1} parent=0 // pred_fallthru
    _
  %v26 = vld [vmem:[%s2] sm:$0xff]
  %v27 = vld [vmem:[%s2 + $0x8] sm:$0xff]
  %v28 = vld [vmem:[%s2 + $0x10] sm:$0xff]
  %v29 = vld [vmem:[%s2 + $0x18] sm:$0xff]
  %v30 = vld [vmem:[%s2 + $0x20] sm:$0xff]
  %v31 = vld [vmem:[%s2 + $0x28] sm:$0xff]
  %v32 = vld [vmem:[%s2 + $0x30] sm:$0xff]
  %v33 = vld [vmem:[%s2 + $0x38] sm:$0xff]
  %v34 = vld [vmem:[%s0] sm:$0xff]
  %v35 = vld [vmem:[%s0 + $0x8] sm:$0xff]
  %v36 = vld [vmem:[%s0 + $0x10] sm:$0xff]
  %v37 = vld [vmem:[%s0 + $0x18] sm:$0xff]
  %v38 = vld [vmem:[%s3] sm:$0xff]
  %v39 = vld [vmem:[%s3 + $0x8] sm:$0xff]
  %v40 = vld [vmem:[%s3 + $0x10] sm:$0xff]
  %v41 = vld [vmem:[%s3 + $0x18] sm:$0xff]
  %v42 = vld [vmem:[%s3 + $0x20] sm:$0xff]
  %v43 = vld [vmem:[%s3 + $0x28] sm:$0xff]
  %v44 = vld [vmem:[%s3 + $0x30] sm:$0xff]
  %v45 = vld [vmem:[%s3 + $0x38] sm:$0xff]
  %v46 = vld [vmem:[%s1] sm:$0xff]
  %v47 = vld [vmem:[%s1 + $0x8] sm:$0xff]
  %v48 = vld [vmem:[%s1 + $0x10] sm:$0xff]
  %v49 = vld [vmem:[%s1 + $0x18] sm:$0xff]
  %vm50 = vcmask 261120
  %v52 = vsel %vm50, %v38, 0
  %v55 = vsel %vm50, %v39, 0
  %v58 = vsel %vm50, %v40, 0
  %v61 = vsel %vm50, %v41, 0
  %v64 = vsel %vm50, %v42, 0
  %v67 = vsel %vm50, %v43, 0
  %v70 = vsel %vm50, %v44, 0
  %v73 = vsel %vm50, %v45, 0
  %75 = vmatprep.subr.mxu0 0.0
  %76 = vmatpush1.msra.mxu0 %v46
  %77 = vmatprep.subr.mxu0 0.0
  %78 = vmatpush1.msra.mxu0 %v47
  %79 = vmatprep.subr.mxu0 0.0
  %80 = vmatpush1.msra.mxu0 %v48
  %81 = vmatprep.subr.mxu0 0.0
  %82 = vmatpush1.msra.mxu0 %v49
  %83 = vmatprep.subr.mxu0 0.0
  %84 = vmatpush1.msra.mxu0 0.0
  %85 = vmatprep.subr.mxu0 0.0
  %86 = vmatpush1.msra.mxu0 0.0
  %87 = vmatprep.subr.mxu0 0.0
  %88 = vmatpush1.msra.mxu0 0.0
  %89 = vmatprep.subr.mxu0 0.0
  %90 = vmatpush1.msra.mxu0 0.0
  %91 = vmatprep.subr.mxu0 0.0
  %92 = vmatpush1.msra.mxu0 0.0
  %93 = vmatprep.subr.mxu0 0.0
  %94 = vmatpush1.msra.mxu0 0.0
  %95 = vmatprep.subr.mxu0 0.0
  %96 = vmatpush1.msra.mxu0 0.0
  %97 = vmatprep.subr.mxu0 0.0
  %98 = vmatpush1.msra.mxu0 0.0
  %99 = vmatprep.subr.mxu0 0.0
  %100 = vmatpush1.msra.mxu0 0.0
  %101 = vmatprep.subr.mxu0 0.0
  %102 = vmatpush1.msra.mxu0 0.0
  %103 = vmatprep.subr.mxu0 0.0
  %104 = vmatpush1.msra.mxu0 0.0
  %105 = vmatprep.subr.mxu0 0.0
  %106 = vmatpush1.msra.mxu0 0.0
  %107 = vmatprep.subr.mxu0 0.0
  %108 = vmatpush1.msra.mxu0 0.0
  %109 = vmatprep.subr.mxu0 0.0
  %110 = vmatpush1.msra.mxu0 0.0
  %111 = vmatprep.subr.mxu0 0.0
  %112 = vmatpush1.msra.mxu0 0.0
  %113 = vmatprep.subr.mxu0 0.0
  %114 = vmatpush1.msra.mxu0 0.0
  %115 = vmatprep.subr.mxu0 0.0
  %116 = vmatpush1.msra.mxu0 0.0
  %117 = vmatprep.subr.mxu0 0.0
  %118 = vmatpush1.msra.mxu0 0.0
  %119 = vmatprep.subr.mxu0 0.0
  %120 = vmatpush1.msra.mxu0 0.0
  %121 = vmatprep.subr.mxu0 0.0
  %122 = vmatpush1.msra.mxu0 0.0
  %123 = vmatprep.subr.mxu0 0.0
  %124 = vmatpush1.msra.mxu0 0.0
  %125 = vmatprep.subr.mxu0 0.0
  %126 = vmatpush1.msra.mxu0 0.0
  %127 = vmatprep.subr.mxu0 0.0
  %128 = vmatpush1.msra.mxu0 0.0
  %129 = vmatprep.subr.mxu0 0.0
  %130 = vmatpush1.msra.mxu0 0.0
  %131 = vmatprep.subr.mxu0 0.0
  %132 = vmatpush1.msra.mxu0 0.0
  %133 = vmatprep.subr.mxu0 0.0
  %134 = vmatpush1.msra.mxu0 0.0
  %135 = vmatprep.subr.mxu0 0.0
  %136 = vmatpush1.msra.mxu0 0.0
  %137 = vmatprep.subr.mxu0 0.0
  %138 = vmatpush1.msra.mxu0 0.0
  %139 = vmatprep.mubr.f32.mxu0 0.0
  %140 = vmatmul.mubr.f32.gmra.mrb[0].mxu0 %v52
  %v141 = vpop.f32.mrb[0].mxu0
  %v142 = vadd.f32 0.0, %v141
  %v143 = vpop.f32.mrb[0].mxu0
  %144 = vmatprep.mubr.f32.mxu0 0.0
  %145 = vmatmul.mubr.f32.gmra.mrb[0].mxu0 %v55
  %v146 = vpop.f32.mrb[0].mxu0
  %v147 = vadd.f32 0.0, %v146
  %v148 = vpop.f32.mrb[0].mxu0
  %149 = vmatprep.mubr.f32.mxu0 0.0
  %150 = vmatmul.mubr.f32.gmra.mrb[0].mxu0 %v58
  %v151 = vpop.f32.mrb[0].mxu0
  %v152 = vadd.f32 0.0, %v151
  %v153 = vpop.f32.mrb[0].mxu0
  %154 = vmatprep.mubr.f32.mxu0 0.0
  %155 = vmatmul.mubr.f32.gmra.mrb[0].mxu0 %v61
  %v156 = vpop.f32.mrb[0].mxu0
  %v157 = vadd.f32 0.0, %v156
  %v158 = vpop.f32.mrb[0].mxu0
  %159 = vmatprep.mubr.f32.mxu0 0.0
  %160 = vmatmul.mubr.f32.gmra.mrb[0].mxu0 %v64
  %v161 = vpop.f32.mrb[0].mxu0
  %v162 = vadd.f32 0.0, %v161
  %v163 = vpop.f32.mrb[0].mxu0
  %164 = vmatprep.mubr.f32.mxu0 0.0
  %165 = vmatmul.mubr.f32.gmra.mrb[0].mxu0 %v67
  %v166 = vpop.f32.mrb[0].mxu0
  %v167 = vadd.f32 0.0, %v166
  %v168 = vpop.f32.mrb[0].mxu0
  %169 = vmatprep.mubr.f32.mxu0 0.0
  %170 = vmatmul.mubr.f32.gmra.mrb[0].mxu0 %v70
  %v171 = vpop.f32.mrb[0].mxu0
  %v172 = vadd.f32 0.0, %v171
  %v173 = vpop.f32.mrb[0].mxu0
  %174 = vmatprep.mubr.f32.mxu0 0.0
  %175 = vmatmul.mubr.f32.gmra.mrb[0].mxu0 %v73
  %v176 = vpop.f32.mrb[0].mxu0
  %v177 = vadd.f32 0.0, %v176
  %v178 = vpop.f32.mrb[0].mxu0
  %179 = vdwg.mxu0
  %v181 = vsel %vm50, %v26, 0
  %v184 = vsel %vm50, %v27, 0
  %v187 = vsel %vm50, %v28, 0
  %v190 = vsel %vm50, %v29, 0
  %v193 = vsel %vm50, %v30, 0
  %v196 = vsel %vm50, %v31, 0
  %v199 = vsel %vm50, %v32, 0
  %v202 = vsel %vm50, %v33, 0
  %204 = vmatprep.subr.mxu0 0.0
  %205 = vmatpush1.msra.mxu0 %v34
  %206 = vmatprep.subr.mxu0 0.0
  %207 = vmatpush1.msra.mxu0 %v35
  %208 = vmatprep.subr.mxu0 0.0
  %209 = vmatpush1.msra.mxu0 %v36
  %210 = vmatprep.subr.mxu0 0.0
  %211 = vmatpush1.msra.mxu0 %v37
  %212 = vmatprep.subr.mxu0 0.0
  %213 = vmatpush1.msra.mxu0 0.0
  %214 = vmatprep.subr.mxu0 0.0
  %215 = vmatpush1.msra.mxu0 0.0
  %216 = vmatprep.subr.mxu0 0.0
  %217 = vmatpush1.msra.mxu0 0.0
  %218 = vmatprep.subr.mxu0 0.0
  %219 = vmatpush1.msra.mxu0 0.0
  %220 = vmatprep.subr.mxu0 0.0
  %221 = vmatpush1.msra.mxu0 0.0
  %222 = vmatprep.subr.mxu0 0.0
  %223 = vmatpush1.msra.mxu0 0.0
  %224 = vmatprep.subr.mxu0 0.0
  %225 = vmatpush1.msra.mxu0 0.0
  %226 = vmatprep.subr.mxu0 0.0
  %227 = vmatpush1.msra.mxu0 0.0
  %228 = vmatprep.subr.mxu0 0.0
  %229 = vmatpush1.msra.mxu0 0.0
  %230 = vmatprep.subr.mxu0 0.0
  %231 = vmatpush1.msra.mxu0 0.0
  %232 = vmatprep.subr.mxu0 0.0
  %233 = vmatpush1.msra.mxu0 0.0
  %234 = vmatprep.subr.mxu0 0.0
  %235 = vmatpush1.msra.mxu0 0.0
  %236 = vmatprep.subr.mxu0 0.0
  %237 = vmatpush1.msra.mxu0 0.0
  %238 = vmatprep.subr.mxu0 0.0
  %239 = vmatpush1.msra.mxu0 0.0
  %240 = vmatprep.subr.mxu0 0.0
  %241 = vmatpush1.msra.mxu0 0.0
  %242 = vmatprep.subr.mxu0 0.0
  %243 = vmatpush1.msra.mxu0 0.0
  %244 = vmatprep.subr.mxu0 0.0
  %245 = vmatpush1.msra.mxu0 0.0
  %246 = vmatprep.subr.mxu0 0.0
  %247 = vmatpush1.msra.mxu0 0.0
  %248 = vmatprep.subr.mxu0 0.0
  %249 = vmatpush1.msra.mxu0 0.0
  %250 = vmatprep.subr.mxu0 0.0
  %251 = vmatpush1.msra.mxu0 0.0
  %252 = vmatprep.subr.mxu0 0.0
  %253 = vmatpush1.msra.mxu0 0.0
  %254 = vmatprep.subr.mxu0 0.0
  %255 = vmatpush1.msra.mxu0 0.0
  %256 = vmatprep.subr.mxu0 0.0
  %257 = vmatpush1.msra.mxu0 0.0
  %258 = vmatprep.subr.mxu0 0.0
  %259 = vmatpush1.msra.mxu0 0.0
  %260 = vmatprep.subr.mxu0 0.0
  %261 = vmatpush1.msra.mxu0 0.0
  %262 = vmatprep.subr.mxu0 0.0
  %263 = vmatpush1.msra.mxu0 0.0
  %264 = vmatprep.subr.mxu0 0.0
  %265 = vmatpush1.msra.mxu0 0.0
  %266 = vmatprep.subr.mxu0 0.0
  %267 = vmatpush1.msra.mxu0 0.0
  %268 = vmatprep.mubr.f32.mxu0 0.0
  %269 = vmatmul.mubr.f32.gmra.mrb[0].mxu0 %v181
  %v270 = vpop.f32.mrb[0].mxu0
  %v271 = vadd.f32 %v142, %v270
  %v272 = vpop.f32.mrb[0].mxu0
  %273 = vmatprep.mubr.f32.mxu0 0.0
  %274 = vmatmul.mubr.f32.gmra.mrb[0].mxu0 %v184
  %v275 = vpop.f32.mrb[0].mxu0
  %v276 = vadd.f32 %v147, %v275
  %v277 = vpop.f32.mrb[0].mxu0
  %278 = vmatprep.mubr.f32.mxu0 0.0
  %279 = vmatmul.mubr.f32.gmra.mrb[0].mxu0 %v187
  %v280 = vpop.f32.mrb[0].mxu0
  %v281 = vadd.f32 %v152, %v280
  %v282 = vpop.f32.mrb[0].mxu0
  %283 = vmatprep.mubr.f32.mxu0 0.0
  %284 = vmatmul.mubr.f32.gmra.mrb[0].mxu0 %v190
  %v285 = vpop.f32.mrb[0].mxu0
  %v286 = vadd.f32 %v157, %v285
  %v287 = vpop.f32.mrb[0].mxu0
  %288 = vmatprep.mubr.f32.mxu0 0.0
  %289 = vmatmul.mubr.f32.gmra.mrb[0].mxu0 %v193
  %v290 = vpop.f32.mrb[0].mxu0
  %v291 = vadd.f32 %v162, %v290
  %v292 = vpop.f32.mrb[0].mxu0
  %293 = vmatprep.mubr.f32.mxu0 0.0
  %294 = vmatmul.mubr.f32.gmra.mrb[0].mxu0 %v196
  %v295 = vpop.f32.mrb[0].mxu0
  %v296 = vadd.f32 %v167, %v295
  %v297 = vpop.f32.mrb[0].mxu0
  %298 = vmatprep.mubr.f32.mxu0 0.0
  %299 = vmatmul.mubr.f32.gmra.mrb[0].mxu0 %v199
  %v300 = vpop.f32.mrb[0].mxu0
  %v301 = vadd.f32 %v172, %v300
  %v302 = vpop.f32.mrb[0].mxu0
  %303 = vmatprep.mubr.f32.mxu0 0.0
  %304 = vmatmul.mubr.f32.gmra.mrb[0].mxu0 %v202
  %v305 = vpop.f32.mrb[0].mxu0
  %v306 = vadd.f32 %v177, %v305
  %v307 = vpop.f32.mrb[0].mxu0
  %308 = vdwg.mxu0
  %v309 = vld [vmem:[%s4] sm:$0xff]
  %v310 = vld [vmem:[%s4 + $0x8] sm:$0xff]
  %v311 = vld [vmem:[%s4 + $0x10] sm:$0xff]
  %v312 = vld [vmem:[%s4 + $0x18] sm:$0xff]
  %v313 = vld [vmem:[%s4 + $0x20] sm:$0xff]
  %v314 = vld [vmem:[%s4 + $0x28] sm:$0xff]
  %v315 = vld [vmem:[%s4 + $0x30] sm:$0xff]
  %v316 = vld [vmem:[%s4 + $0x38] sm:$0xff]
  %318 = vset.pattern.permute.xlu0 0
  %319 = vperm.xlu0 %318, %v309
  %v320 = vpop.permute.xlu0 %319
  %323 = vset.pattern.permute.xlu0 0
  %324 = vperm.xlu0 %323, %v310
  %v325 = vpop.permute.xlu0 %324
  %328 = vset.pattern.permute.xlu0 0
  %329 = vperm.xlu0 %328, %v311
  %v330 = vpop.permute.xlu0 %329
  %333 = vset.pattern.permute.xlu0 0
  %334 = vperm.xlu0 %333, %v312
  %v335 = vpop.permute.xlu0 %334
  %338 = vset.pattern.permute.xlu0 0
  %339 = vperm.xlu0 %338, %v313
  %v340 = vpop.permute.xlu0 %339
  %343 = vset.pattern.permute.xlu0 0
  %344 = vperm.xlu0 %343, %v314
  %v345 = vpop.permute.xlu0 %344
  %348 = vset.pattern.permute.xlu0 0
  %349 = vperm.xlu0 %348, %v315
  %v350 = vpop.permute.xlu0 %349
  %353 = vset.pattern.permute.xlu0 0
  %354 = vperm.xlu0 %353, %v316
  %v355 = vpop.permute.xlu0 %354
  %v357 = vadd.f32 %v271, %v320
  %v358 = vadd.f32 %v276, %v325
  %v359 = vadd.f32 %v281, %v330
  %v360 = vadd.f32 %v286, %v335
  %v361 = vadd.f32 %v291, %v340
  %v362 = vadd.f32 %v296, %v345
  %v363 = vadd.f32 %v301, %v350
  %v364 = vadd.f32 %v306, %v355
  %v365 = vmax.f32 %v357, 0.0
  %v366 = vmax.f32 %v358, 0.0
  %v367 = vmax.f32 %v359, 0.0
  %v368 = vmax.f32 %v360, 0.0
  %v369 = vmax.f32 %v361, 0.0
  %v370 = vmax.f32 %v362, 0.0
  %v371 = vmax.f32 %v363, 0.0
  %v372 = vmax.f32 %v364, 0.0
  %v373 = vld [vmem:[%s5] sm:$0xff]
  %v374 = vld [vmem:[%s5 + $0x8] sm:$0xff]
  %v375 = vld [vmem:[%s6] sm:$0xff]
  %v376 = vld [vmem:[%s6 + $0x8] sm:$0xff]
  %378 = vset.pattern.permute.xlu0 0
  %379 = vperm.xlu0 %378, %v375
  %v380 = vpop.permute.xlu0 %379
  %383 = vset.pattern.permute.xlu0 0
  %384 = vperm.xlu0 %383, %v376
  %v385 = vpop.permute.xlu0 %384
  %vm387 = vcmask 523264
  %v389 = vsel %vm387, %v373, 0
  %v392 = vsel %vm387, %v374, 0
  %394 = vmatprep.subr.mxu0 0.0
  %395 = vmatpush1.msra.mxu0 %v365
  %396 = vmatprep.subr.mxu0 0.0
  %397 = vmatpush1.msra.mxu0 %v366
  %398 = vmatprep.subr.mxu0 0.0
  %399 = vmatpush1.msra.mxu0 %v367
  %400 = vmatprep.subr.mxu0 0.0
  %401 = vmatpush1.msra.mxu0 %v368
  %402 = vmatprep.subr.mxu0 0.0
  %403 = vmatpush1.msra.mxu0 %v369
  %404 = vmatprep.subr.mxu0 0.0
  %405 = vmatpush1.msra.mxu0 %v370
  %406 = vmatprep.subr.mxu0 0.0
  %407 = vmatpush1.msra.mxu0 %v371
  %408 = vmatprep.subr.mxu0 0.0
  %409 = vmatpush1.msra.mxu0 %v372
  %410 = vmatprep.subr.mxu0 0.0
  %411 = vmatpush1.msra.mxu0 0.0
  %412 = vmatprep.subr.mxu0 0.0
  %413 = vmatpush1.msra.mxu0 0.0
  %414 = vmatprep.subr.mxu0 0.0
  %415 = vmatpush1.msra.mxu0 0.0
  %416 = vmatprep.subr.mxu0 0.0
  %417 = vmatpush1.msra.mxu0 0.0
  %418 = vmatprep.subr.mxu0 0.0
  %419 = vmatpush1.msra.mxu0 0.0
  %420 = vmatprep.subr.mxu0 0.0
  %421 = vmatpush1.msra.mxu0 0.0
  %422 = vmatprep.subr.mxu0 0.0
  %423 = vmatpush1.msra.mxu0 0.0
  %424 = vmatprep.subr.mxu0 0.0
  %425 = vmatpush1.msra.mxu0 0.0
  %426 = vmatprep.subr.mxu0 0.0
  %427 = vmatpush1.msra.mxu0 0.0
  %428 = vmatprep.subr.mxu0 0.0
  %429 = vmatpush1.msra.mxu0 0.0
  %430 = vmatprep.subr.mxu0 0.0
  %431 = vmatpush1.msra.mxu0 0.0
  %432 = vmatprep.subr.mxu0 0.0
  %433 = vmatpush1.msra.mxu0 0.0
  %434 = vmatprep.subr.mxu0 0.0
  %435 = vmatpush1.msra.mxu0 0.0
  %436 = vmatprep.subr.mxu0 0.0
  %437 = vmatpush1.msra.mxu0 0.0
  %438 = vmatprep.subr.mxu0 0.0
  %439 = vmatpush1.msra.mxu0 0.0
  %440 = vmatprep.subr.mxu0 0.0
  %441 = vmatpush1.msra.mxu0 0.0
  %442 = vmatprep.subr.mxu0 0.0
  %443 = vmatpush1.msra.mxu0 0.0
  %444 = vmatprep.subr.mxu0 0.0
  %445 = vmatpush1.msra.mxu0 0.0
  %446 = vmatprep.subr.mxu0 0.0
  %447 = vmatpush1.msra.mxu0 0.0
  %448 = vmatprep.subr.mxu0 0.0
  %449 = vmatpush1.msra.mxu0 0.0
  %450 = vmatprep.subr.mxu0 0.0
  %451 = vmatpush1.msra.mxu0 0.0
  %452 = vmatprep.subr.mxu0 0.0
  %453 = vmatpush1.msra.mxu0 0.0
  %454 = vmatprep.subr.mxu0 0.0
  %455 = vmatpush1.msra.mxu0 0.0
  %456 = vmatprep.subr.mxu0 0.0
  %457 = vmatpush1.msra.mxu0 0.0
  %458 = vmatprep.mubr.f32.mxu0 0.0
  %459 = vmatmul.mubr.f32.gmra.mrb[0].mxu0 %v389
  %v460 = vpop.f32.mrb[0].mxu0
  %v461 = vadd.f32 %v380, %v460
  %v462 = vpop.f32.mrb[0].mxu0
  %463 = vmatprep.mubr.f32.mxu0 0.0
  %464 = vmatmul.mubr.f32.gmra.mrb[0].mxu0 %v392
  %v465 = vpop.f32.mrb[0].mxu0
  %v466 = vadd.f32 %v385, %v465
  %v467 = vpop.f32.mrb[0].mxu0
  %468 = vdwg.mxu0
  %vm469 = vcmask 64512
  %470 = vst.msk [vmem:[%s7] sm:$0xff] %vm469, %v461
  %471 = vst.msk [vmem:[%s7 + $0x8] sm:$0xff] %vm469, %v466
  // Predicated region
  $region30: #{tpu_custom_call.1} parent=0 // pred_check
    _
  $region31: #{tpu_custom_call.1} parent=0 // pred_check_branch
    %473 = sbr.rel (0) target = $region33
  $region32: #{tpu_custom_call.1} parent=0 // pred_region
    _
  $region33: #{tpu_custom_call.1} parent=0 // pred_fallthru
    _
  // Predicated region
  $region34: #{tpu_custom_call.1} parent=0 // pred_check
    _
  $region35: #{tpu_custom_call.1} parent=0 // pred_check_branch
    %475 = sbr.rel (0) target = $region37
  $region36: #{tpu_custom_call.1} parent=0 // pred_region
    _
  $region37: #{tpu_custom_call.1} parent=0 // pred_fallthru
    _

</llo_original>
